<compile_context>
chip_gen: v7x
topology: tpu7x:2x2x1
jax: 0.10.0
libtpu: 0.0.40
codegen_flags: <defaults>
</compile_context>

<pallas_src>
import functools
import math

import jax
import jax.numpy as jnp
from jax.experimental import pallas as pl
from jax.experimental.pallas import tpu as pltpu


def _pos_encoding_kernel(delta_ref, x_ref, w_ref, fp_ref, out_ref, *, tile_t):
    """One (row-tile, time-tile) block.

    delta_ref: (TILE_R, T)        f32  delta_t over the FULL time axis (block is
                                       grid-invariant along the time-tile axis,
                                       so it is DMA'd once per row tile).
    x_ref:     (TILE_R, TILE_T*E)      input embeddings, time folded into lanes.
    w_ref:     (TILE_T, TILE_T*E) f32  one-hot lane-expansion matrix (constant).
    fp_ref:    (2, TILE_T*E)      f32  row 0 = factor tiled over the time tile,
                                       row 1 = phase (0 -> sin cols, pi/2 -> cos cols).
    out_ref:   (TILE_R, TILE_T*E)
    """
    # delta columns for this time tile -> (TILE_R, TILE_T)
    if delta_ref.shape[1] == tile_t:          # time axis not tiled (common case)
        d = delta_ref[...]
    else:
        start = pl.multiple_of(pl.program_id(1) * tile_t, tile_t)
        d = delta_ref[:, pl.ds(start, tile_t)]

    # Lane-dense expansion: (TILE_R, TILE_T) @ (TILE_T, TILE_T*E) one-hot matrix
    # replicates each delta value E times along lanes.  The MXU is otherwise
    # idle; HIGHEST precision makes the 1.0 * delta pass-through exact.
    d_wide = jnp.dot(
        d, w_ref[...],
        preferred_element_type=jnp.float32,
        precision=jax.lax.Precision.HIGHEST,
    )                                                            # (TILE_R, L)

    # pe[..., 2i]   = sin(delta * factor_i)            (phase 0)
    # pe[..., 2i+1] = cos(delta * factor_i)            (phase pi/2)
    angles = d_wide * fp_ref[0:1, :] + fp_ref[1:2, :]
    pe = jnp.sin(angles)

    out_ref[...] = (x_ref[...] + pe).astype(out_ref.dtype)


def positional_encoding_forward(input_encoded, timesteps, max_length=5000):
    """input_encoded: [B, S, T, E]; timesteps: [B, S, T] or [B, 1, T] integer."""
    B, S, T, E = input_encoded.shape
    assert E % 2 == 0, "PositionEncoding needs an even embedding dimension"

    timesteps = jnp.broadcast_to(jnp.asarray(timesteps, jnp.int32), (B, S, T))

    # ---- tiny prolog in plain JAX (negligible traffic, fused by XLA) -----------
    min_t = jnp.min(timesteps, axis=(1, 2), keepdims=True)       # per-batch min
    delta_t = (timesteps - min_t).astype(jnp.float32)            # (B, S, T)

    # ---- lane-dense layout: rows = (batch, series), lanes = time * embedding ---
    R = B * S
    x2 = input_encoded.reshape(R, T * E)     # free reshape (row-major contiguous)
    delta2 = delta_t.reshape(R, T)

    # ---- tile selection ---------------------------------------------------------
    MAX_LANE_BYTES = 4096 * 4       # lane width per block <= 16 KiB (f32)
    MAX_W_BYTES = 2 << 20           # one-hot expansion matrix <= 2 MiB
    MAX_BLOCK_BYTES = 2 << 20       # x / out / delta blocks <= 2 MiB each

    quantum = 128 // math.gcd(E, 128)   # smallest tile_t with (tile_t*E) % 128 == 0

    def _tile_ok(c):
        return (c * E * 4 <= MAX_LANE_BYTES) and (c * c * E * 4 <= MAX_W_BYTES)

    cands = [T] if _tile_ok(T) else []
    c = quantum
    while c < T:
        if T % c == 0 and _tile_ok(c):
            cands.append(c)
        c += quantum
    # TODO(synk): for very long T with no friendly divisor, pad T in the wrapper;
    # the fallback below is correct but may use a large VMEM block.
    tile_t = max(cands) if cands else T
    L = tile_t * E
    num_t = T // tile_t

    # row tile: multiple of 8 that divides R (or full R), block <= MAX_BLOCK_BYTES
    max_rows = max(8, min(MAX_BLOCK_BYTES // (L * 4), MAX_BLOCK_BYTES // (T * 4)))
    tile_r = R
    if R % 8 == 0:
        c = 8
        while c <= min(R, max_rows):
            if R % c == 0:
                tile_r = c
            c += 8
    num_r = R // tile_r

    # ---- grid-invariant constants (built once host-side, loaded once to VMEM) --
    factor_half = jnp.exp(
        jnp.arange(0, E, 2, dtype=jnp.float32) * (-math.log(10000.0) / E))  # (E//2,)
    factor_full = jnp.repeat(factor_half, 2)                                 # (E,)
    phase_full = jnp.tile(jnp.array([0.0, math.pi / 2.0], jnp.float32), E // 2)
    fp = jnp.stack([jnp.tile(factor_full, tile_t),
                    jnp.tile(phase_full, tile_t)], axis=0)                   # (2, L)
    w = jnp.repeat(jnp.eye(tile_t, dtype=jnp.float32), E, axis=1)            # (tile_t, L)

    out2 = pl.pallas_call(
        functools.partial(_pos_encoding_kernel, tile_t=tile_t),
        out_shape=jax.ShapeDtypeStruct((R, T * E), input_encoded.dtype),
        grid_spec=pltpu.PrefetchScalarGridSpec(
            num_scalar_prefetch=0,
            grid=(num_r, num_t),
            in_specs=[
                pl.BlockSpec((tile_r, T), lambda r, t: (r, 0)),   # delta (reused over t)
                pl.BlockSpec((tile_r, L), lambda r, t: (r, t)),   # x
                pl.BlockSpec((tile_t, L), lambda r, t: (0, 0)),   # one-hot W (constant)
                pl.BlockSpec((2, L), lambda r, t: (0, 0)),        # factor / phase
            ],
            out_specs=pl.BlockSpec((tile_r, L), lambda r, t: (r, t)),
        ),
        compiler_params=pltpu.CompilerParams(
            dimension_semantics=("parallel", "parallel"),
            vmem_limit_bytes=32 * 1024 * 1024,
        ),
    )(delta2, x2, w, fp)

    # dropout: eval mode -> identity
    return out2.reshape(B, S, T, E)


def _reference(input_encoded, timesteps, max_length=5000):
    """Pure-JAX reference mirroring the PyTorch module exactly (eval mode)."""
    B, S, T, E = input_encoded.shape
    pos = jnp.arange(max_length, dtype=jnp.float32)[:, None]
    factor = jnp.exp(jnp.arange(0, E, 2, dtype=jnp.float32) * (-math.log(10000.0) / E))
    pe = jnp.zeros((max_length, E), dtype=jnp.float32)
    pe = pe.at[:, 0::2].set(jnp.sin(pos * factor))
    pe = pe.at[:, 1::2].set(jnp.cos(pos * factor))
    ts = jnp.broadcast_to(jnp.asarray(timesteps, jnp.int32), (B, S, T))
    min_t = jnp.min(jnp.min(ts, axis=1, keepdims=True), axis=2, keepdims=True)
    delta_t = ts - min_t
    return input_encoded + pe[delta_t]


if __name__ == "__main__":
    B, S, T, E = 2, 4, 8, 32
    key = jax.random.PRNGKey(0)
    k_x, k_t = jax.random.split(key)

    input_encoded = jax.random.normal(k_x, (B, S, T, E), dtype=jnp.float32)
    # integer timesteps, unaligned / unordered, per (batch, series, time)
    timesteps = jax.random.randint(k_t, (B, S, T), minval=3, maxval=200, dtype=jnp.int32)

    out = jax.block_until_ready(positional_encoding_forward(input_encoded, timesteps))
    ref = jax.block_until_ready(_reference(input_encoded, timesteps))

    assert out.shape == (B, S, T, E)
    # atol 1e-4: the sin(x + pi/2) == cos(x) trick changes rounding on the odd
    # (cosine) columns by a few f32 ulps of the angle relative to the table.
    assert jnp.allclose(out, ref, atol=1e-4, rtol=1e-5), "mismatch vs reference"

    print("KERNEL_OK")
</pallas_src>

<mosaic_0001>
module attributes {stable_mosaic.version = 11 : i64} {
  func.func @_pos_encoding_kernel(%arg0: i32, %arg1: i32, %arg2: memref<8x8xf32, #tpu.memory_space<vmem>>, %arg3: memref<8x256xf32, #tpu.memory_space<vmem>>, %arg4: memref<8x256xf32, #tpu.memory_space<vmem>>, %arg5: memref<2x256xf32, #tpu.memory_space<vmem>>, %arg6: memref<8x256xf32, #tpu.memory_space<vmem>>) attributes {dimension_semantics = [#tpu.dimension_semantics<parallel>, #tpu.dimension_semantics<parallel>], iteration_bounds = array<i64: 1, 1>, scalar_prefetch = 0 : i64, scratch_operands = 0 : i64, tpu.core_type = #tpu.core_type<tc>, window_params = [{transform_indices = @transform_0, window_bounds = array<i64: 8, 8>}, {transform_indices = @transform_1, window_bounds = array<i64: 8, 256>}, {pipeline_mode = #tpu.pipeline_mode<synchronous>, transform_indices = @transform_2, window_bounds = array<i64: 8, 256>}, {pipeline_mode = #tpu.pipeline_mode<synchronous>, transform_indices = @transform_3, window_bounds = array<i64: 2, 256>}, {transform_indices = @transform_4, window_bounds = array<i64: 8, 256>}]} {
    %c0 = arith.constant 0 : index
    %c0_0 = arith.constant 0 : index
    %0 = vector.load %arg2[%c0, %c0_0] : memref<8x8xf32, #tpu.memory_space<vmem>>, vector<8x8xf32>
    %c0_1 = arith.constant 0 : index
    %c0_2 = arith.constant 0 : index
    %1 = vector.load %arg4[%c0_1, %c0_2] : memref<8x256xf32, #tpu.memory_space<vmem>>, vector<8x256xf32>
    %cst = arith.constant dense<0.000000e+00> : vector<8x256xf32>
    %2 = tpu.matmul %0, %1, %cst {dimension_numbers = #tpu.dot_dimension_numbers<[1], [0], [0], [1], [0, 0, 1, 1], [], []>, precision = #tpu.contract_precision<fp32>} : vector<8x8xf32>, vector<8x256xf32>, vector<8x256xf32> -> vector<8x256xf32>
    %c0_3 = arith.constant 0 : index
    %c0_4 = arith.constant 0 : index
    %3 = vector.load %arg5[%c0_3, %c0_4] : memref<2x256xf32, #tpu.memory_space<vmem>>, vector<1x256xf32>
    %4 = vector.broadcast %3 : vector<1x256xf32> to vector<8x256xf32>
    %5 = arith.mulf %2, %4 : vector<8x256xf32>
    %c1 = arith.constant 1 : index
    %c0_5 = arith.constant 0 : index
    %6 = vector.load %arg5[%c1, %c0_5] : memref<2x256xf32, #tpu.memory_space<vmem>>, vector<1x256xf32>
    %7 = vector.broadcast %6 : vector<1x256xf32> to vector<8x256xf32>
    %8 = arith.addf %5, %7 : vector<8x256xf32>
    %9 = math.sin %8 : vector<8x256xf32>
    %c0_6 = arith.constant 0 : index
    %c0_7 = arith.constant 0 : index
    %10 = vector.load %arg3[%c0_6, %c0_7] : memref<8x256xf32, #tpu.memory_space<vmem>>, vector<8x256xf32>
    %11 = arith.addf %10, %9 : vector<8x256xf32>
    %c0_8 = arith.constant 0 : index
    %c0_9 = arith.constant 0 : index
    %12 = vector.load %arg6[%c0_8, %c0_9] : memref<8x256xf32, #tpu.memory_space<vmem>>, vector<8x256xf32>
    tpu.vector_store %arg6[%c0_8, %c0_9], %11 {strides = array<i32>} : memref<8x256xf32, #tpu.memory_space<vmem>>, vector<8x256xf32>,
    return
  }
  func.func @transform_0(%arg0: i32, %arg1: i32) -> (i32, i32) {
    %c0_i32 = arith.constant 0 : i32
    %c0_i32_0 = arith.constant 0 : i32
    return %arg0, %c0_i32 : i32, i32
  }
  func.func @transform_1(%arg0: i32, %arg1: i32) -> (i32, i32) {
    %c0_i32 = arith.constant 0 : i32
    return %arg0, %arg1 : i32, i32
  }
  func.func @transform_2(%arg0: i32, %arg1: i32) -> (i32, i32) {
    %c0_i32 = arith.constant 0 : i32
    %c0_i32_0 = arith.constant 0 : i32
    %c0_i32_1 = arith.constant 0 : i32
    return %c0_i32, %c0_i32_0 : i32, i32
  }
  func.func @transform_3(%arg0: i32, %arg1: i32) -> (i32, i32) {
    %c0_i32 = arith.constant 0 : i32
    %c0_i32_0 = arith.constant 0 : i32
    %c0_i32_1 = arith.constant 0 : i32
    return %c0_i32, %c0_i32_0 : i32, i32
  }
  func.func @transform_4(%arg0: i32, %arg1: i32) -> (i32, i32) {
    %c0_i32 = arith.constant 0 : i32
    return %arg0, %arg1 : i32, i32
  }
}

</mosaic_0001>

<llo_original>
// kernel: tpu_custom_call.1
$region0: #{tpu_custom_call.1}
  #allocation0 [shape = 'u32[]', space=smem, size = 0x4, offset = 0x4, fixed_abs, tag = 'smem constant byte address 0x4 - core index']
  #allocation1 [shape = 'u32[144,128]{1,0:T(1,128)}', space=vmem, size = 0x12000, scoped, tag = 'internal scratch']
  %s0 = inlined_call_operand.hbm [shape: f32[8,8], index: 0, kind: input, shape index: {}]
  %s1 = inlined_call_operand.hbm [shape: f32[8,256], index: 1, kind: input, shape index: {}]
  %s2 = inlined_call_operand.hbm [shape: f32[8,256], index: 2, kind: input, shape index: {}]
  %s3 = inlined_call_operand.vmem [shape: f32[2,256], index: 3, kind: input, shape index: {}]
  %s4 = inlined_call_operand.hbm [shape: f32[8,256], index: 4, kind: output, shape index: {}]
  %s5 = sld [smem:[#allocation0]]
  $region38: #{tpu_custom_call.1} parent=0
    _
  %s7 = ssub.s32 1, %s5
  %s8 = scalar_select 0, %s7, %s5
  $region1: #{tpu_custom_call.1} parent=0
    #allocation2 [shape = 'u8[4096]{0}', space=vmem, size = 0x1000, scoped, tag = 'input window, operand 0, single buffered']
    #allocation3 [shape = 's32[1]{0}', space=sflag, size = 0x4, scoped, tag = 'scoped memory for tpu_custom_call.1']
    #allocation4 [shape = 's32[1]{0}', space=sflag, size = 0x4, scoped, tag = 'scoped memory for tpu_custom_call.1']
    #allocation5 [shape = 'u8[8192]{0}', space=vmem, size = 0x2000, scoped, tag = 'input window, operand 1, single buffered']
    #allocation6 [shape = 's32[1]{0}', space=sflag, size = 0x4, scoped, tag = 'scoped memory for tpu_custom_call.1']
    #allocation7 [shape = 'u8[8192]{0}', space=vmem, size = 0x2000, scoped, tag = 'input window, operand 2, single buffered']
    #allocation8 [shape = 'u8[8192]{0}', space=vmem, size = 0x2000, scoped, tag = 'output window, operand 0, single buffered']
    %9 = vsyncpa [#allocation3], 0
    %10 = vsyncpa [#allocation6], 0
    %11 = vsyncpa [#allocation4], 0
    // Predicated region
    $region2: #{tpu_custom_call.1} parent=1 // pred_check
      _
    $region3: #{tpu_custom_call.1} parent=1 // pred_check_branch
      %13 = sbr.rel (0) target = $region5
    $region4: #{tpu_custom_call.1} parent=1 // pred_region
      %s15 = ssub.s32 128, 128
      %16 = vsyncadd [#allocation3], %s15
      %s18 = sshll.u32 [#allocation2], 4
      %s19 = int_to_ptr.vmem [resolvable:$true] %s18
      %21 = dma.hbm_to_vmem [thread:$0]  %s0, 128, %s19, [#allocation3]
    $region5: #{tpu_custom_call.1} parent=1 // pred_fallthru
      _
    // Predicated region
    $region6: #{tpu_custom_call.1} parent=1 // pred_check
      _
    $region7: #{tpu_custom_call.1} parent=1 // pred_check_branch
      %23 = sbr.rel (0) target = $region9
    $region8: #{tpu_custom_call.1} parent=1 // pred_region
      %s25 = ssub.s32 256, 256
      %26 = vsyncadd [#allocation6], %s25
      %s28 = sshll.u32 [#allocation5], 4
      %s29 = int_to_ptr.vmem [resolvable:$true] %s28
      %31 = dma.hbm_to_vmem [thread:$0]  %s1, 256, %s29, [#allocation6]
    $region9: #{tpu_custom_call.1} parent=1 // pred_fallthru
      _
    // Predicated region
    $region10: #{tpu_custom_call.1} parent=1 // pred_check
      _
    $region11: #{tpu_custom_call.1} parent=1 // pred_check_branch
      %33 = sbr.rel (0) target = $region13
    $region12: #{tpu_custom_call.1} parent=1 // pred_region
      %s35 = ssub.s32 256, 256
      %36 = vsyncadd [#allocation6], %s35
      %s38 = sshll.u32 [#allocation7], 4
      %s39 = int_to_ptr.vmem [resolvable:$true] %s38
      %41 = dma.hbm_to_vmem [thread:$0]  %s2, 256, %s39, [#allocation6]
    $region13: #{tpu_custom_call.1} parent=1 // pred_fallthru
      _
    // Predicated region
    $region14: #{tpu_custom_call.1} parent=1 // pred_check
      _
    $region15: #{tpu_custom_call.1} parent=1 // pred_check_branch
      %43 = sbr.rel (0) target = $region17
    $region16: #{tpu_custom_call.1} parent=1 // pred_region
      _
    $region17: #{tpu_custom_call.1} parent=1 // pred_fallthru
      _
    // Predicated region
    $region18: #{tpu_custom_call.1} parent=1 // pred_check
      _
    $region19: #{tpu_custom_call.1} parent=1 // pred_check_branch
      %45 = sbr.rel (0) target = $region21
    $region20: #{tpu_custom_call.1} parent=1 // pred_region
      %46 = dma.done [#allocation3], 128
    $region21: #{tpu_custom_call.1} parent=1 // pred_fallthru
      _
    // Predicated region
    $region22: #{tpu_custom_call.1} parent=1 // pred_check
      _
    $region23: #{tpu_custom_call.1} parent=1 // pred_check_branch
      %48 = sbr.rel (0) target = $region25
    $region24: #{tpu_custom_call.1} parent=1 // pred_region
      %49 = dma.done [#allocation6], 256
    $region25: #{tpu_custom_call.1} parent=1 // pred_fallthru
      _
    // Predicated region
    $region26: #{tpu_custom_call.1} parent=1 // pred_check
      _
    $region27: #{tpu_custom_call.1} parent=1 // pred_check_branch
      %51 = sbr.rel (0) target = $region29
    $region28: #{tpu_custom_call.1} parent=1 // pred_region
      %52 = dma.done [#allocation6], 256
    $region29: #{tpu_custom_call.1} parent=1 // pred_fallthru
      _
    %v53 = vld [vmem:[#allocation2] sm:$0xff]
    %v54 = vld [vmem:[#allocation7] sm:$0xff]
    %v55 = vld [vmem:[#allocation7 + $0x8] sm:$0xff]
    %vm56 = vcmask 64512
    %v58 = vsel %vm56, %v53, 0
    %v60 = vand.u32 %v55, 4294901760
    %61 = vmatprep.subr.mxu0 %v60
    %v62 = vand.u32 %v54, 4294901760
    %63 = vmatpush1.msra.mxu0 %v62
    %64 = vmatprep.subr.mxu0 0.0
    %65 = vmatpush1.msra.mxu0 0.0
    %66 = vmatprep.subr.mxu0 0.0
    %67 = vmatpush1.msra.mxu0 0.0
    %68 = vmatprep.subr.mxu0 0.0
    %69 = vmatpush1.msra.mxu0 0.0
    %70 = vmatprep.subr.mxu0 0.0
    %71 = vmatpush1.msra.mxu0 0.0
    %72 = vmatprep.subr.mxu0 0.0
    %73 = vmatpush1.msra.mxu0 0.0
    %74 = vmatprep.subr.mxu0 0.0
    %75 = vmatpush1.msra.mxu0 0.0
    %76 = vmatprep.subr.mxu0 0.0
    %77 = vmatpush1.msra.mxu0 0.0
    %78 = vmatprep.subr.mxu0 0.0
    %79 = vmatpush1.msra.mxu0 0.0
    %80 = vmatprep.subr.mxu0 0.0
    %81 = vmatpush1.msra.mxu0 0.0
    %82 = vmatprep.subr.mxu0 0.0
    %83 = vmatpush1.msra.mxu0 0.0
    %84 = vmatprep.subr.mxu0 0.0
    %85 = vmatpush1.msra.mxu0 0.0
    %86 = vmatprep.subr.mxu0 0.0
    %87 = vmatpush1.msra.mxu0 0.0
    %88 = vmatprep.subr.mxu0 0.0
    %89 = vmatpush1.msra.mxu0 0.0
    %90 = vmatprep.subr.mxu0 0.0
    %91 = vmatpush1.msra.mxu0 0.0
    %92 = vmatprep.subr.mxu0 0.0
    %93 = vmatpush1.msra.mxu0 0.0
    %94 = vmatprep.subr.mxu0 0.0
    %95 = vmatpush1.msra.mxu0 0.0
    %96 = vmatprep.subr.mxu0 0.0
    %97 = vmatpush1.msra.mxu0 0.0
    %98 = vmatprep.subr.mxu0 0.0
    %99 = vmatpush1.msra.mxu0 0.0
    %100 = vmatprep.subr.mxu0 0.0
    %101 = vmatpush1.msra.mxu0 0.0
    %102 = vmatprep.subr.mxu0 0.0
    %103 = vmatpush1.msra.mxu0 0.0
    %104 = vmatprep.subr.mxu0 0.0
    %105 = vmatpush1.msra.mxu0 0.0
    %106 = vmatprep.subr.mxu0 0.0
    %107 = vmatpush1.msra.mxu0 0.0
    %108 = vmatprep.subr.mxu0 0.0
    %109 = vmatpush1.msra.mxu0 0.0
    %110 = vmatprep.subr.mxu0 0.0
    %111 = vmatpush1.msra.mxu0 0.0
    %112 = vmatprep.subr.mxu0 0.0
    %113 = vmatpush1.msra.mxu0 0.0
    %114 = vmatprep.subr.mxu0 0.0
    %115 = vmatpush1.msra.mxu0 0.0
    %116 = vmatprep.subr.mxu0 0.0
    %117 = vmatpush1.msra.mxu0 0.0
    %118 = vmatprep.subr.mxu0 0.0
    %119 = vmatpush1.msra.mxu0 0.0
    %120 = vmatprep.subr.mxu0 0.0
    %121 = vmatpush1.msra.mxu0 0.0
    %122 = vmatprep.subr.mxu0 0.0
    %123 = vmatpush1.msra.mxu0 0.0
    %124 = vmatprep.subr.mxu0 0.0
    %125 = vmatpush1.msra.mxu0 0.0
    %126 = vmatprep.mubr.f32.mxu0 0.0
    %v127 = vand.u32 %v58, 4294901760
    %v128 = vsub.f32 %v58, %v127
    %v129 = vand.u32 %v128, 4294901760
    %v130 = vsub.f32 %v128, %v129
    %v131 = vand.u32 %v130, 4294901760
    %132 = vmatmul.mubr.f32.gmra.mrb[0].mxu0 %v131
    %v133 = vpop.f32.mrb[0].mxu0
    %v134 = vadd.f32 0.0, %v133
    %v135 = vpop.f32.mrb[0].mxu0
    %v136 = vadd.f32 0.0, %v135
    %137 = vdwg.mxu0
    %v138 = vand.u32 %v55, 4294901760
    %v139 = vsub.f32 %v55, %v138
    %v140 = vand.u32 %v139, 4294901760
    %v141 = vsub.f32 %v139, %v140
    %v142 = vand.u32 %v141, 4294901760
    %143 = vmatprep.subr.mxu0 %v142
    %v144 = vand.u32 %v54, 4294901760
    %v145 = vsub.f32 %v54, %v144
    %v146 = vand.u32 %v145, 4294901760
    %v147 = vsub.f32 %v145, %v146
    %v148 = vand.u32 %v147, 4294901760
    %149 = vmatpush1.msra.mxu0 %v148
    %150 = vmatprep.subr.mxu0 0.0
    %151 = vmatpush1.msra.mxu0 0.0
    %152 = vmatprep.subr.mxu0 0.0
    %153 = vmatpush1.msra.mxu0 0.0
    %154 = vmatprep.subr.mxu0 0.0
    %155 = vmatpush1.msra.mxu0 0.0
    %156 = vmatprep.subr.mxu0 0.0
    %157 = vmatpush1.msra.mxu0 0.0
    %158 = vmatprep.subr.mxu0 0.0
    %159 = vmatpush1.msra.mxu0 0.0
    %160 = vmatprep.subr.mxu0 0.0
    %161 = vmatpush1.msra.mxu0 0.0
    %162 = vmatprep.subr.mxu0 0.0
    %163 = vmatpush1.msra.mxu0 0.0
    %164 = vmatprep.subr.mxu0 0.0
    %165 = vmatpush1.msra.mxu0 0.0
    %166 = vmatprep.subr.mxu0 0.0
    %167 = vmatpush1.msra.mxu0 0.0
    %168 = vmatprep.subr.mxu0 0.0
    %169 = vmatpush1.msra.mxu0 0.0
    %170 = vmatprep.subr.mxu0 0.0
    %171 = vmatpush1.msra.mxu0 0.0
    %172 = vmatprep.subr.mxu0 0.0
    %173 = vmatpush1.msra.mxu0 0.0
    %174 = vmatprep.subr.mxu0 0.0
    %175 = vmatpush1.msra.mxu0 0.0
    %176 = vmatprep.subr.mxu0 0.0
    %177 = vmatpush1.msra.mxu0 0.0
    %178 = vmatprep.subr.mxu0 0.0
    %179 = vmatpush1.msra.mxu0 0.0
    %180 = vmatprep.subr.mxu0 0.0
    %181 = vmatpush1.msra.mxu0 0.0
    %182 = vmatprep.subr.mxu0 0.0
    %183 = vmatpush1.msra.mxu0 0.0
    %184 = vmatprep.subr.mxu0 0.0
    %185 = vmatpush1.msra.mxu0 0.0
    %186 = vmatprep.subr.mxu0 0.0
    %187 = vmatpush1.msra.mxu0 0.0
    %188 = vmatprep.subr.mxu0 0.0
    %189 = vmatpush1.msra.mxu0 0.0
    %190 = vmatprep.subr.mxu0 0.0
    %191 = vmatpush1.msra.mxu0 0.0
    %192 = vmatprep.subr.mxu0 0.0
    %193 = vmatpush1.msra.mxu0 0.0
    %194 = vmatprep.subr.mxu0 0.0
    %195 = vmatpush1.msra.mxu0 0.0
    %196 = vmatprep.subr.mxu0 0.0
    %197 = vmatpush1.msra.mxu0 0.0
    %198 = vmatprep.subr.mxu0 0.0
    %199 = vmatpush1.msra.mxu0 0.0
    %200 = vmatprep.subr.mxu0 0.0
    %201 = vmatpush1.msra.mxu0 0.0
    %202 = vmatprep.subr.mxu0 0.0
    %203 = vmatpush1.msra.mxu0 0.0
    %204 = vmatprep.subr.mxu0 0.0
    %205 = vmatpush1.msra.mxu0 0.0
    %206 = vmatprep.subr.mxu0 0.0
    %207 = vmatpush1.msra.mxu0 0.0
    %208 = vmatprep.subr.mxu0 0.0
    %209 = vmatpush1.msra.mxu0 0.0
    %210 = vmatprep.subr.mxu0 0.0
    %211 = vmatpush1.msra.mxu0 0.0
    %212 = vmatprep.mubr.f32.mxu0 0.0
    %v213 = vand.u32 %v58, 4294901760
    %214 = vmatmul.mubr.f32.gmra.mrb[0].mxu0 %v213
    %v215 = vpop.f32.mrb[0].mxu0
    %v216 = vadd.f32 %v134, %v215
    %v217 = vpop.f32.mrb[0].mxu0
    %v218 = vadd.f32 %v136, %v217
    %219 = vdwg.mxu0
    %v220 = vand.u32 %v55, 4294901760
    %v221 = vsub.f32 %v55, %v220
    %222 = vmatprep.subr.mxu0 %v221
    %v223 = vand.u32 %v54, 4294901760
    %v224 = vsub.f32 %v54, %v223
    %225 = vmatpush1.msra.mxu0 %v224
    %226 = vmatprep.subr.mxu0 0.0
    %227 = vmatpush1.msra.mxu0 0.0
    %228 = vmatprep.subr.mxu0 0.0
    %229 = vmatpush1.msra.mxu0 0.0
    %230 = vmatprep.subr.mxu0 0.0
    %231 = vmatpush1.msra.mxu0 0.0
    %232 = vmatprep.subr.mxu0 0.0
    %233 = vmatpush1.msra.mxu0 0.0
    %234 = vmatprep.subr.mxu0 0.0
    %235 = vmatpush1.msra.mxu0 0.0
    %236 = vmatprep.subr.mxu0 0.0
    %237 = vmatpush1.msra.mxu0 0.0
    %238 = vmatprep.subr.mxu0 0.0
    %239 = vmatpush1.msra.mxu0 0.0
    %240 = vmatprep.subr.mxu0 0.0
    %241 = vmatpush1.msra.mxu0 0.0
    %242 = vmatprep.subr.mxu0 0.0
    %243 = vmatpush1.msra.mxu0 0.0
    %244 = vmatprep.subr.mxu0 0.0
    %245 = vmatpush1.msra.mxu0 0.0
    %246 = vmatprep.subr.mxu0 0.0
    %247 = vmatpush1.msra.mxu0 0.0
    %248 = vmatprep.subr.mxu0 0.0
    %249 = vmatpush1.msra.mxu0 0.0
    %250 = vmatprep.subr.mxu0 0.0
    %251 = vmatpush1.msra.mxu0 0.0
    %252 = vmatprep.subr.mxu0 0.0
    %253 = vmatpush1.msra.mxu0 0.0
    %254 = vmatprep.subr.mxu0 0.0
    %255 = vmatpush1.msra.mxu0 0.0
    %256 = vmatprep.subr.mxu0 0.0
    %257 = vmatpush1.msra.mxu0 0.0
    %258 = vmatprep.subr.mxu0 0.0
    %259 = vmatpush1.msra.mxu0 0.0
    %260 = vmatprep.subr.mxu0 0.0
    %261 = vmatpush1.msra.mxu0 0.0
    %262 = vmatprep.subr.mxu0 0.0
    %263 = vmatpush1.msra.mxu0 0.0
    %264 = vmatprep.subr.mxu0 0.0
    %265 = vmatpush1.msra.mxu0 0.0
    %266 = vmatprep.subr.mxu0 0.0
    %267 = vmatpush1.msra.mxu0 0.0
    %268 = vmatprep.subr.mxu0 0.0
    %269 = vmatpush1.msra.mxu0 0.0
    %270 = vmatprep.subr.mxu0 0.0
    %271 = vmatpush1.msra.mxu0 0.0
    %272 = vmatprep.subr.mxu0 0.0
    %273 = vmatpush1.msra.mxu0 0.0
    %274 = vmatprep.subr.mxu0 0.0
    %275 = vmatpush1.msra.mxu0 0.0
    %276 = vmatprep.subr.mxu0 0.0
    %277 = vmatpush1.msra.mxu0 0.0
    %278 = vmatprep.subr.mxu0 0.0
    %279 = vmatpush1.msra.mxu0 0.0
    %280 = vmatprep.subr.mxu0 0.0
    %281 = vmatpush1.msra.mxu0 0.0
    %282 = vmatprep.subr.mxu0 0.0
    %283 = vmatpush1.msra.mxu0 0.0
    %284 = vmatprep.subr.mxu0 0.0
    %285 = vmatpush1.msra.mxu0 0.0
    %286 = vmatprep.subr.mxu0 0.0
    %287 = vmatpush1.msra.mxu0 0.0
    %288 = vmatprep.mubr.f32.mxu0 0.0
    %v289 = vand.u32 %v58, 4294901760
    %v290 = vsub.f32 %v58, %v289
    %291 = vmatmul.mubr.f32.gmra.mrb[0].mxu0 %v290
    %v292 = vpop.f32.mrb[0].mxu0
    %v293 = vadd.f32 %v216, %v292
    %v294 = vpop.f32.mrb[0].mxu0
    %v295 = vadd.f32 %v218, %v294
    %296 = vdwg.mxu0
    %v297 = vand.u32 %v55, 4294901760
    %298 = vmatprep.subr.mxu0 %v297
    %v299 = vand.u32 %v54, 4294901760
    %300 = vmatpush1.msra.mxu0 %v299
    %301 = vmatprep.subr.mxu0 0.0
    %302 = vmatpush1.msra.mxu0 0.0
    %303 = vmatprep.subr.mxu0 0.0
    %304 = vmatpush1.msra.mxu0 0.0
    %305 = vmatprep.subr.mxu0 0.0
    %306 = vmatpush1.msra.mxu0 0.0
    %307 = vmatprep.subr.mxu0 0.0
    %308 = vmatpush1.msra.mxu0 0.0
    %309 = vmatprep.subr.mxu0 0.0
    %310 = vmatpush1.msra.mxu0 0.0
    %311 = vmatprep.subr.mxu0 0.0
    %312 = vmatpush1.msra.mxu0 0.0
    %313 = vmatprep.subr.mxu0 0.0
    %314 = vmatpush1.msra.mxu0 0.0
    %315 = vmatprep.subr.mxu0 0.0
    %316 = vmatpush1.msra.mxu0 0.0
    %317 = vmatprep.subr.mxu0 0.0
    %318 = vmatpush1.msra.mxu0 0.0
    %319 = vmatprep.subr.mxu0 0.0
    %320 = vmatpush1.msra.mxu0 0.0
    %321 = vmatprep.subr.mxu0 0.0
    %322 = vmatpush1.msra.mxu0 0.0
    %323 = vmatprep.subr.mxu0 0.0
    %324 = vmatpush1.msra.mxu0 0.0
    %325 = vmatprep.subr.mxu0 0.0
    %326 = vmatpush1.msra.mxu0 0.0
    %327 = vmatprep.subr.mxu0 0.0
    %328 = vmatpush1.msra.mxu0 0.0
    %329 = vmatprep.subr.mxu0 0.0
    %330 = vmatpush1.msra.mxu0 0.0
    %331 = vmatprep.subr.mxu0 0.0
    %332 = vmatpush1.msra.mxu0 0.0
    %333 = vmatprep.subr.mxu0 0.0
    %334 = vmatpush1.msra.mxu0 0.0
    %335 = vmatprep.subr.mxu0 0.0
    %336 = vmatpush1.msra.mxu0 0.0
    %337 = vmatprep.subr.mxu0 0.0
    %338 = vmatpush1.msra.mxu0 0.0
    %339 = vmatprep.subr.mxu0 0.0
    %340 = vmatpush1.msra.mxu0 0.0
    %341 = vmatprep.subr.mxu0 0.0
    %342 = vmatpush1.msra.mxu0 0.0
    %343 = vmatprep.subr.mxu0 0.0
    %344 = vmatpush1.msra.mxu0 0.0
    %345 = vmatprep.subr.mxu0 0.0
    %346 = vmatpush1.msra.mxu0 0.0
    %347 = vmatprep.subr.mxu0 0.0
    %348 = vmatpush1.msra.mxu0 0.0
    %349 = vmatprep.subr.mxu0 0.0
    %350 = vmatpush1.msra.mxu0 0.0
    %351 = vmatprep.subr.mxu0 0.0
    %352 = vmatpush1.msra.mxu0 0.0
    %353 = vmatprep.subr.mxu0 0.0
    %354 = vmatpush1.msra.mxu0 0.0
    %355 = vmatprep.subr.mxu0 0.0
    %356 = vmatpush1.msra.mxu0 0.0
    %357 = vmatprep.subr.mxu0 0.0
    %358 = vmatpush1.msra.mxu0 0.0
    %359 = vmatprep.subr.mxu0 0.0
    %360 = vmatpush1.msra.mxu0 0.0
    %361 = vmatprep.subr.mxu0 0.0
    %362 = vmatpush1.msra.mxu0 0.0
    %363 = vmatprep.mubr.f32.mxu0 0.0
    %v364 = vand.u32 %v58, 4294901760
    %v365 = vsub.f32 %v58, %v364
    %v366 = vand.u32 %v365, 4294901760
    %367 = vmatmul.mubr.f32.gmra.mrb[0].mxu0 %v366
    %v368 = vpop.f32.mrb[0].mxu0
    %v369 = vadd.f32 %v293, %v368
    %v370 = vpop.f32.mrb[0].mxu0
    %v371 = vadd.f32 %v295, %v370
    %372 = vdwg.mxu0
    %v373 = vand.u32 %v55, 4294901760
    %v374 = vsub.f32 %v55, %v373
    %v375 = vand.u32 %v374, 4294901760
    %376 = vmatprep.subr.mxu0 %v375
    %v377 = vand.u32 %v54, 4294901760
    %v378 = vsub.f32 %v54, %v377
    %v379 = vand.u32 %v378, 4294901760
    %380 = vmatpush1.msra.mxu0 %v379
    %381 = vmatprep.subr.mxu0 0.0
    %382 = vmatpush1.msra.mxu0 0.0
    %383 = vmatprep.subr.mxu0 0.0
    %384 = vmatpush1.msra.mxu0 0.0
    %385 = vmatprep.subr.mxu0 0.0
    %386 = vmatpush1.msra.mxu0 0.0
    %387 = vmatprep.subr.mxu0 0.0
    %388 = vmatpush1.msra.mxu0 0.0
    %389 = vmatprep.subr.mxu0 0.0
    %390 = vmatpush1.msra.mxu0 0.0
    %391 = vmatprep.subr.mxu0 0.0
    %392 = vmatpush1.msra.mxu0 0.0
    %393 = vmatprep.subr.mxu0 0.0
    %394 = vmatpush1.msra.mxu0 0.0
    %395 = vmatprep.subr.mxu0 0.0
    %396 = vmatpush1.msra.mxu0 0.0
    %397 = vmatprep.subr.mxu0 0.0
    %398 = vmatpush1.msra.mxu0 0.0
    %399 = vmatprep.subr.mxu0 0.0
    %400 = vmatpush1.msra.mxu0 0.0
    %401 = vmatprep.subr.mxu0 0.0
    %402 = vmatpush1.msra.mxu0 0.0
    %403 = vmatprep.subr.mxu0 0.0
    %404 = vmatpush1.msra.mxu0 0.0
    %405 = vmatprep.subr.mxu0 0.0
    %406 = vmatpush1.msra.mxu0 0.0
    %407 = vmatprep.subr.mxu0 0.0
    %408 = vmatpush1.msra.mxu0 0.0
    %409 = vmatprep.subr.mxu0 0.0
    %410 = vmatpush1.msra.mxu0 0.0
    %411 = vmatprep.subr.mxu0 0.0
    %412 = vmatpush1.msra.mxu0 0.0
    %413 = vmatprep.subr.mxu0 0.0
    %414 = vmatpush1.msra.mxu0 0.0
    %415 = vmatprep.subr.mxu0 0.0
    %416 = vmatpush1.msra.mxu0 0.0
    %417 = vmatprep.subr.mxu0 0.0
    %418 = vmatpush1.msra.mxu0 0.0
    %419 = vmatprep.subr.mxu0 0.0
    %420 = vmatpush1.msra.mxu0 0.0
    %421 = vmatprep.subr.mxu0 0.0
    %422 = vmatpush1.msra.mxu0 0.0
    %423 = vmatprep.subr.mxu0 0.0
    %424 = vmatpush1.msra.mxu0 0.0
    %425 = vmatprep.subr.mxu0 0.0
    %426 = vmatpush1.msra.mxu0 0.0
    %427 = vmatprep.subr.mxu0 0.0
    %428 = vmatpush1.msra.mxu0 0.0
    %429 = vmatprep.subr.mxu0 0.0
    %430 = vmatpush1.msra.mxu0 0.0
    %431 = vmatprep.subr.mxu0 0.0
    %432 = vmatpush1.msra.mxu0 0.0
    %433 = vmatprep.subr.mxu0 0.0
    %434 = vmatpush1.msra.mxu0 0.0
    %435 = vmatprep.subr.mxu0 0.0
    %436 = vmatpush1.msra.mxu0 0.0
    %437 = vmatprep.subr.mxu0 0.0
    %438 = vmatpush1.msra.mxu0 0.0
    %439 = vmatprep.subr.mxu0 0.0
    %440 = vmatpush1.msra.mxu0 0.0
    %441 = vmatprep.subr.mxu0 0.0
    %442 = vmatpush1.msra.mxu0 0.0
    %443 = vmatprep.mubr.f32.mxu0 0.0
    %v444 = vand.u32 %v58, 4294901760
    %445 = vmatmul.mubr.f32.gmra.mrb[0].mxu0 %v444
    %v446 = vpop.f32.mrb[0].mxu0
    %v447 = vadd.f32 %v369, %v446
    %v448 = vpop.f32.mrb[0].mxu0
    %v449 = vadd.f32 %v371, %v448
    %450 = vdwg.mxu0
    %v451 = vand.u32 %v55, 4294901760
    %452 = vmatprep.subr.mxu0 %v451
    %v453 = vand.u32 %v54, 4294901760
    %454 = vmatpush1.msra.mxu0 %v453
    %455 = vmatprep.subr.mxu0 0.0
    %456 = vmatpush1.msra.mxu0 0.0
    %457 = vmatprep.subr.mxu0 0.0
    %458 = vmatpush1.msra.mxu0 0.0
    %459 = vmatprep.subr.mxu0 0.0
    %460 = vmatpush1.msra.mxu0 0.0
    %461 = vmatprep.subr.mxu0 0.0
    %462 = vmatpush1.msra.mxu0 0.0
    %463 = vmatprep.subr.mxu0 0.0
    %464 = vmatpush1.msra.mxu0 0.0
    %465 = vmatprep.subr.mxu0 0.0
    %466 = vmatpush1.msra.mxu0 0.0
    %467 = vmatprep.subr.mxu0 0.0
    %468 = vmatpush1.msra.mxu0 0.0
    %469 = vmatprep.subr.mxu0 0.0
    %470 = vmatpush1.msra.mxu0 0.0
    %471 = vmatprep.subr.mxu0 0.0
    %472 = vmatpush1.msra.mxu0 0.0
    %473 = vmatprep.subr.mxu0 0.0
    %474 = vmatpush1.msra.mxu0 0.0
    %475 = vmatprep.subr.mxu0 0.0
    %476 = vmatpush1.msra.mxu0 0.0
    %477 = vmatprep.subr.mxu0 0.0
    %478 = vmatpush1.msra.mxu0 0.0
    %479 = vmatprep.subr.mxu0 0.0
    %480 = vmatpush1.msra.mxu0 0.0
    %481 = vmatprep.subr.mxu0 0.0
    %482 = vmatpush1.msra.mxu0 0.0
    %483 = vmatprep.subr.mxu0 0.0
    %484 = vmatpush1.msra.mxu0 0.0
    %485 = vmatprep.subr.mxu0 0.0
    %486 = vmatpush1.msra.mxu0 0.0
    %487 = vmatprep.subr.mxu0 0.0
    %488 = vmatpush1.msra.mxu0 0.0
    %489 = vmatprep.subr.mxu0 0.0
    %490 = vmatpush1.msra.mxu0 0.0
    %491 = vmatprep.subr.mxu0 0.0
    %492 = vmatpush1.msra.mxu0 0.0
    %493 = vmatprep.subr.mxu0 0.0
    %494 = vmatpush1.msra.mxu0 0.0
    %495 = vmatprep.subr.mxu0 0.0
    %496 = vmatpush1.msra.mxu0 0.0
    %497 = vmatprep.subr.mxu0 0.0
    %498 = vmatpush1.msra.mxu0 0.0
    %499 = vmatprep.subr.mxu0 0.0
    %500 = vmatpush1.msra.mxu0 0.0
    %501 = vmatprep.subr.mxu0 0.0
    %502 = vmatpush1.msra.mxu0 0.0
    %503 = vmatprep.subr.mxu0 0.0
    %504 = vmatpush1.msra.mxu0 0.0
    %505 = vmatprep.subr.mxu0 0.0
    %506 = vmatpush1.msra.mxu0 0.0
    %507 = vmatprep.subr.mxu0 0.0
    %508 = vmatpush1.msra.mxu0 0.0
    %509 = vmatprep.subr.mxu0 0.0
    %510 = vmatpush1.msra.mxu0 0.0
    %511 = vmatprep.subr.mxu0 0.0
    %512 = vmatpush1.msra.mxu0 0.0
    %513 = vmatprep.subr.mxu0 0.0
    %514 = vmatpush1.msra.mxu0 0.0
    %515 = vmatprep.subr.mxu0 0.0
    %516 = vmatpush1.msra.mxu0 0.0
    %517 = vmatprep.mubr.f32.mxu0 0.0
    %v518 = vand.u32 %v58, 4294901760
    %519 = vmatmul.mubr.f32.gmra.mrb[0].mxu0 %v518
    %v520 = vpop.f32.mrb[0].mxu0
    %v521 = vadd.f32 %v447, %v520
    %v522 = vpop.f32.mrb[0].mxu0
    %v523 = vadd.f32 %v449, %v522
    %524 = vdwg.mxu0
    %v525 = vld [vmem:[%s3] ss:$2 sm:$0x3]
    %v527 = vlaneseq
    %v528 = vshrl.u32 %v527, 7
    %v529 = vsub.s32 0, %v528
    %v530 = vrot.slane %v525, %v529
    %v531 = vlaneseq
    %v532 = vshrl.u32 %v531, 7
    %v533 = vsub.s32 1, %v532
    %v534 = vrot.slane %v525, %v533
    %v537 = vmul.f32 %v521, %v530
    %v538 = vmul.f32 %v523, %v534
    %s539 = scalar_lea.vmem %s3, 1
    %v540 = vld [vmem:[%s539] ss:$2 sm:$0x3]
    %v542 = vlaneseq
    %v543 = vshrl.u32 %v542, 7
    %v544 = vsub.s32 0, %v543
    %v545 = vrot.slane %v540, %v544
    %v546 = vlaneseq
    %v547 = vshrl.u32 %v546, 7
    %v548 = vsub.s32 1, %v547
    %v549 = vrot.slane %v540, %v548
    %v552 = vadd.f32 %v537, %v545
    %v553 = vadd.f32 %v538, %v549
    %v554 = vand.u32 2147483647, %v552
    %vm555 = vcmp.le.f32.partialorder %v554, 0.7853982
    %vm556 = vcmp.lt.s32.totalorder %v552, 0
    %v557 = vand.u32 %v552, 2139095040
    %v558 = vshrl.u32 %v557, 23
    %v559 = vsub.s32 %v558, 127
    %v560 = vand.u32 2147483647, %v552
    %v561 = vand.u32 %v560, 8388607
    %v562 = vor.u32 %v561, 8388608
    %v563 = vsub.s32 0, %v562
    %v564 = vadd.s32 %v559, 1
    %vm565 = vcmp.gt.s32.totalorder %v564, 0
    %v566 = vsel %vm565, %v564, 0
    %v567 = vshrl.u32 %v566, 5
    %v568 = vand.u32 %v566, 31
    %v569 = vsub.s32 32, %v568
    %v570 = vshrl.u32 683565275, %v569
    %v571 = vshll.u32 683565275, %v568
    %v572 = vshrl.u32 2475754826, %v569
    %v573 = vor.u32 %v571, %v572
    %v574 = vshll.u32 2475754826, %v568
    %v575 = vshrl.u32 2131351028, %v569
    %v576 = vor.u32 %v574, %v575
    %v577 = vshll.u32 2131351028, %v568
    %v578 = vshrl.u32 2102212464, %v569
    %v579 = vor.u32 %v577, %v578
    %v580 = vshll.u32 2102212464, %v568
    %v581 = vshrl.u32 920167782, %v569
    %v582 = vor.u32 %v580, %v581
    %v583 = vshll.u32 920167782, %v568
    %v584 = vshrl.u32 1326507024, %v569
    %v585 = vor.u32 %v583, %v584
    %vm586 = vcmp.lt.s32.totalorder %v567, 1
    %vm587 = vcmp.lt.s32.totalorder %v567, 2
    %vm588 = vcmp.lt.s32.totalorder %v567, 3
    %vm589 = vcmp.lt.s32.totalorder %v567, 4
    %v590 = vsel %vm586, %v570, %v573
    %v591 = vsel %vm589, %v579, 2102212464
    %v592 = vsel %vm588, %v576, %v591
    %v593 = vsel %vm587, %v590, %v592
    %v594 = vsel %vm586, %v573, %v576
    %v595 = vsel %vm589, %v582, 920167782
    %v596 = vsel %vm588, %v579, %v595
    %v597 = vsel %vm587, %v594, %v596
    %v598 = vsel %vm586, %v576, %v579
    %v599 = vsel %vm589, %v585, 1326507024
    %v600 = vsel %vm588, %v582, %v599
    %v601 = vsel %vm587, %v598, %v600
    %v602 = vshll.u32 %v562, 8
    %v603 = vmul.u32.u64.compose %v602, %v601
    %v604 = vextract.low.u32 %v603
    %v605 = vextract.high.u32 %v603
    %v606 = vmul.u32.u64.compose %v602, %v597
    %v607 = vextract.low.u32 %v606
    %v608 = vextract.high.u32 %v606
    %v609 = vmul.u32 %v602, %v593
    %v610 = vadd.s32 %v605, %v607
    %vm611 = vc.u32 %v605, %v607
    %v612 = vadd.s32 %v608, 1
    %v613 = vsel %vm611, %v612, %v608
    %v614 = vadd.s32 %v609, %v613
    %v615 = vadd.s32 %v614, 536870912
    %v616 = vshrl.u32 %v615, 30
    %v617 = vshll.u32 %v616, 30
    %v618 = vsub.s32 %v614, %v617
    %vm619 = vcmp.lt.s32.totalorder %v618, 0
    %v620 = vsub.s32 0, %v618
    %v621 = vsel %vm619, %v620, %v618
    %v622 = vclz %v621
    %v623 = vsub.s32 %v622, 2
    %vm624 = vcmp.gt.s32.totalorder 0, %v623
    %v625 = vsel %vm624, 0, %v623
    %v626 = vsub.s32 32, %v625
    %v627 = vshll.u32 %v618, %v625
    %v628 = vshrl.u32 %v610, %v626
    %v629 = vor.u32 %v627, %v628
    %v630 = vsub.s32 4294967266, %v625
    %v631 = vadd.s32 %v630, 127
    %v632 = vshll.u32 %v631, 23
    %v633 = vor.u32 4788187, %v632
    %v634 = vand.u32 2147483647, %v633
    %v636 = vcvt.s32.f32 %v629
    %v637 = vmul.f32 %v636, %v634
    %v638 = vxor.u32 %v637, 2147483648
    %v639 = vsel %vm556, %v638, %v637
    %v640 = vsub.s32 4, %v616
    %v641 = vsel %vm556, %v640, %v616
    %v642 = vsel %vm555, %v552, %v639
    %v643 = vsel %vm555, 0, %v641
    %v644 = vcosq.f32.pop %v642
    %v645 = vsinq.f32.pop %v642
    %vm646 = vweird.f32 %v552
    %v647 = vadd.s32 %v643, 3
    %v648 = vand.u32 %v647, 3
    %vm649 = vcmp.lt.s32.totalorder %v648, 2
    %vm650 = vcmp.eq.s32.totalorder %v648, 0
    %v651 = vxor.u32 %v645, 2147483648
    %v652 = vsel %vm650, %v644, %v651
    %vm653 = vcmp.eq.s32.totalorder %v648, 2
    %v654 = vxor.u32 %v644, 2147483648
    %v655 = vsel %vm653, %v654, %v645
    %v656 = vsel %vm649, %v652, %v655
    %v657 = vsel %vm646, nan, %v656
    %v658 = vand.u32 2147483647, %v553
    %vm659 = vcmp.le.f32.partialorder %v658, 0.7853982
    %vm660 = vcmp.lt.s32.totalorder %v553, 0
    %v661 = vand.u32 %v553, 2139095040
    %v662 = vshrl.u32 %v661, 23
    %v663 = vsub.s32 %v662, 127
    %v664 = vand.u32 2147483647, %v553
    %v665 = vand.u32 %v664, 8388607
    %v666 = vor.u32 %v665, 8388608
    %v667 = vsub.s32 0, %v666
    %v668 = vadd.s32 %v663, 1
    %vm669 = vcmp.gt.s32.totalorder %v668, 0
    %v670 = vsel %vm669, %v668, 0
    %v671 = vshrl.u32 %v670, 5
    %v672 = vand.u32 %v670, 31
    %v673 = vsub.s32 32, %v672
    %v674 = vshrl.u32 683565275, %v673
    %v675 = vshll.u32 683565275, %v672
    %v676 = vshrl.u32 2475754826, %v673
    %v677 = vor.u32 %v675, %v676
    %v678 = vshll.u32 2475754826, %v672
    %v679 = vshrl.u32 2131351028, %v673
    %v680 = vor.u32 %v678, %v679
    %v681 = vshll.u32 2131351028, %v672
    %v682 = vshrl.u32 2102212464, %v673
    %v683 = vor.u32 %v681, %v682
    %v684 = vshll.u32 2102212464, %v672
    %v685 = vshrl.u32 920167782, %v673
    %v686 = vor.u32 %v684, %v685
    %v687 = vshll.u32 920167782, %v672
    %v688 = vshrl.u32 1326507024, %v673
    %v689 = vor.u32 %v687, %v688
    %vm690 = vcmp.lt.s32.totalorder %v671, 1
    %vm691 = vcmp.lt.s32.totalorder %v671, 2
    %vm692 = vcmp.lt.s32.totalorder %v671, 3
    %vm693 = vcmp.lt.s32.totalorder %v671, 4
    %v694 = vsel %vm690, %v674, %v677
    %v695 = vsel %vm693, %v683, 2102212464
    %v696 = vsel %vm692, %v680, %v695
    %v697 = vsel %vm691, %v694, %v696
    %v698 = vsel %vm690, %v677, %v680
    %v699 = vsel %vm693, %v686, 920167782
    %v700 = vsel %vm692, %v683, %v699
    %v701 = vsel %vm691, %v698, %v700
    %v702 = vsel %vm690, %v680, %v683
    %v703 = vsel %vm693, %v689, 1326507024
    %v704 = vsel %vm692, %v686, %v703
    %v705 = vsel %vm691, %v702, %v704
    %v706 = vshll.u32 %v666, 8
    %v707 = vmul.u32.u64.compose %v706, %v705
    %v708 = vextract.low.u32 %v707
    %v709 = vextract.high.u32 %v707
    %v710 = vmul.u32.u64.compose %v706, %v701
    %v711 = vextract.low.u32 %v710
    %v712 = vextract.high.u32 %v710
    %v713 = vmul.u32 %v706, %v697
    %v714 = vadd.s32 %v709, %v711
    %vm715 = vc.u32 %v709, %v711
    %v716 = vadd.s32 %v712, 1
    %v717 = vsel %vm715, %v716, %v712
    %v718 = vadd.s32 %v713, %v717
    %v719 = vadd.s32 %v718, 536870912
    %v720 = vshrl.u32 %v719, 30
    %v721 = vshll.u32 %v720, 30
    %v722 = vsub.s32 %v718, %v721
    %vm723 = vcmp.lt.s32.totalorder %v722, 0
    %v724 = vsub.s32 0, %v722
    %v725 = vsel %vm723, %v724, %v722
    %v726 = vclz %v725
    %v727 = vsub.s32 %v726, 2
    %vm728 = vcmp.gt.s32.totalorder 0, %v727
    %v729 = vsel %vm728, 0, %v727
    %v730 = vsub.s32 32, %v729
    %v731 = vshll.u32 %v722, %v729
    %v732 = vshrl.u32 %v714, %v730
    %v733 = vor.u32 %v731, %v732
    %v734 = vsub.s32 4294967266, %v729
    %v735 = vadd.s32 %v734, 127
    %v736 = vshll.u32 %v735, 23
    %v737 = vor.u32 4788187, %v736
    %v738 = vand.u32 2147483647, %v737
    %v740 = vcvt.s32.f32 %v733
    %v741 = vmul.f32 %v740, %v738
    %v742 = vxor.u32 %v741, 2147483648
    %v743 = vsel %vm660, %v742, %v741
    %v744 = vsub.s32 4, %v720
    %v745 = vsel %vm660, %v744, %v720
    %v746 = vsel %vm659, %v553, %v743
    %v747 = vsel %vm659, 0, %v745
    %v748 = vcosq.f32.pop %v746
    %v749 = vsinq.f32.pop %v746
    %vm750 = vweird.f32 %v553
    %v751 = vadd.s32 %v747, 3
    %v752 = vand.u32 %v751, 3
    %vm753 = vcmp.lt.s32.totalorder %v752, 2
    %vm754 = vcmp.eq.s32.totalorder %v752, 0
    %v755 = vxor.u32 %v749, 2147483648
    %v756 = vsel %vm754, %v748, %v755
    %vm757 = vcmp.eq.s32.totalorder %v752, 2
    %v758 = vxor.u32 %v748, 2147483648
    %v759 = vsel %vm757, %v758, %v749
    %v760 = vsel %vm753, %v756, %v759
    %v761 = vsel %vm750, nan, %v760
    %v762 = vld [vmem:[#allocation5] sm:$0xff]
    %v763 = vld [vmem:[#allocation5 + $0x8] sm:$0xff]
    %v764 = vadd.f32 %v762, %v657
    %v765 = vadd.f32 %v763, %v761
    %766 = vst [vmem:[#allocation8] sm:$0xff] %v764
    %767 = vst [vmem:[#allocation8 + $0x8] sm:$0xff] %v765
    // Predicated region
    $region30: #{tpu_custom_call.1} parent=1 // pred_check
      _
    $region31: #{tpu_custom_call.1} parent=1 // pred_check_branch
      %769 = sbr.rel (0) target = $region33
    $region32: #{tpu_custom_call.1} parent=1 // pred_region
      %s771 = ssub.s32 256, 256
      %772 = vsyncadd [#allocation4], %s771
      %s774 = sshll.u32 [#allocation8], 4
      %s775 = int_to_ptr.vmem [resolvable:$true] %s774
      %777 = dma.vmem_to_hbm [thread:$0]  %s775, 256, %s4, [#allocation4]
    $region33: #{tpu_custom_call.1} parent=1 // pred_fallthru
      _
    // Predicated region
    $region34: #{tpu_custom_call.1} parent=1 // pred_check
      _
    $region35: #{tpu_custom_call.1} parent=1 // pred_check_branch
      %779 = sbr.rel (0) target = $region37
    $region36: #{tpu_custom_call.1} parent=1 // pred_region
      %780 = dma.done [#allocation4], 256
    $region37: #{tpu_custom_call.1} parent=1 // pred_fallthru
      _
    %781 = vsyncpa [#allocation3], 1
    %782 = vsyncpa [#allocation6], 1
    %783 = vsyncpa [#allocation4], 1

</llo_original>
